<compile_context>
chip_gen: v7x
topology: tpu7x:2x2x1
jax: 0.10.0
libtpu: 0.0.40
codegen_flags: <defaults>
</compile_context>

<pallas_src>
import math

import numpy as np
import jax
import jax.numpy as jnp
from jax.experimental import pallas as pl
from jax.experimental.pallas import tpu as pltpu

_LANE = 128


def _round_up(a: int, m: int) -> int:
    return ((a + m - 1) // m) * m


def _ceil_div(a: int, b: int) -> int:
    return -(-a // b)


def _tpu_caps():
    """(num_tensorcores, vmem_capacity_bytes) with safe fallbacks."""
    ncores, vmem_cap = 1, 64 << 20
    info = None
    try:
        get_info = getattr(pltpu, "get_tpu_info", None)
        if get_info is not None:
            info = get_info()
    except Exception:
        info = None
    if info is not None:
        for attr in ("num_tensorcores", "tensorcores_per_chip",
                     "num_cores", "cores_per_chip", "core_count"):
            v = getattr(info, attr, None)
            if isinstance(v, int) and v > 0:
                ncores = v
                break
        v = getattr(info, "vmem_capacity_bytes", None)
        if isinstance(v, int) and v > 0:
            vmem_cap = v
    return ncores, vmem_cap


# ----------------------------------------------------------------------------
# Group / representation bookkeeping (SO(2)-style irreps: irrep 0 is 1-dim
# trivial, irrep k>=1 is the 2-dim rotation irrep).  Host-side parameter setup.
# ----------------------------------------------------------------------------
def irrep_dim(i: int) -> int:
    return 1 if i == 0 else 2


def expand_fields(mults):
    fields = []
    for i, m in enumerate(mults):
        fields += [i] * m
    return fields


def build_equivariant_linear(key, in_mults, out_mults):
    """Build the expanded equivariant weight (D_out, D_in) and bias (D_out,)."""
    in_fields = expand_fields(in_mults)
    out_fields = expand_fields(out_mults)
    in_off = np.cumsum([0] + [irrep_dim(i) for i in in_fields])
    out_off = np.cumsum([0] + [irrep_dim(i) for i in out_fields])
    d_in, d_out = int(in_off[-1]), int(out_off[-1])

    # Count free parameters (Schur's lemma basis sizes).
    n_w = 0
    for jo in out_fields:
        for ji in in_fields:
            if jo == ji:
                n_w += 1 if jo == 0 else 2
    n_b = sum(1 for jo in out_fields if jo == 0)  # bias only on trivial irreps

    kw, kb = jax.random.split(key)
    w_params = np.asarray(
        jax.random.normal(kw, (max(n_w, 1),), jnp.float32)) / np.sqrt(max(d_in, 1))
    b_params = np.asarray(
        jax.random.normal(kb, (max(n_b, 1),), jnp.float32)) * 0.1

    W = np.zeros((d_out, d_in), np.float32)
    J = np.array([[0.0, -1.0], [1.0, 0.0]], np.float32)
    I2 = np.eye(2, dtype=np.float32)
    pw = 0
    for a, jo in enumerate(out_fields):
        for c, ji in enumerate(in_fields):
            if jo != ji:
                continue
            ro, co = int(out_off[a]), int(in_off[c])
            if jo == 0:
                W[ro, co] = w_params[pw]
                pw += 1
            else:
                W[ro:ro + 2, co:co + 2] = w_params[pw] * I2 + w_params[pw + 1] * J
                pw += 2
    bias = np.zeros((d_out,), np.float32)
    pb = 0
    for a, jo in enumerate(out_fields):
        if jo == 0:
            bias[int(out_off[a])] = b_params[pb]
            pb += 1
    return jnp.asarray(W), jnp.asarray(bias)


# ----------------------------------------------------------------------------
# Pallas kernel: y = x @ Wt + b on a block of (packed) rows.
# ----------------------------------------------------------------------------
def _proj_kernel(x_ref, wt_ref, b_ref, o_ref):
    # x_ref : (row_block, K)          input rows (possibly lane-packed)
    # wt_ref: (K, Kout) float32       pre-transposed / block-diagonal weight
    # b_ref : (1, Kout) float32       (tiled) bias
    # o_ref : (row_block, Kout)
    x = x_ref[...].astype(jnp.float32)   # keep full-precision weights & acc
    y = jnp.dot(x, wt_ref[...], preferred_element_type=jnp.float32)
    o_ref[...] = (y + b_ref[...]).astype(o_ref.dtype)


def general_projection(x, W, b, row_block=2048):
    """Equivalent of GeneralProjection.forward: flatten leading dims, project.

    Returns y of shape (N, D_out) with y[r, :] = x_flat[r, :] @ W.T + b.
    When D_in and D_out both divide 128, P rows are packed into the 128-lane
    axis and the weight is expanded to a block-diagonal (P*D_in, P*D_out)
    matrix on the host, so the kernel stays lane-dense with no feature padding
    in HBM.
    """
    d_out, d_in = int(W.shape[0]), int(W.shape[1])
    assert x.shape[-1] == d_in, "last dim of x must equal in_type size"
    x_flat = x.reshape(-1, d_in)
    n = int(x_flat.shape[0])
    itemsize = int(jnp.dtype(x.dtype).itemsize)

    ncores, vmem_cap = _tpu_caps()

    # --- Row-packing factor P: smallest P with P*d_in and P*d_out multiples of
    # 128 (possible iff d_in, d_out both divide 128).  P == 1 -> fallback path
    # with true-width (un-padded) features; Mosaic pads to lanes in VMEM only.
    can_pack = (0 < d_in <= _LANE and 0 < d_out <= _LANE
                and _LANE % d_in == 0 and _LANE % d_out == 0)
    if can_pack:
        p_in, p_out = _LANE // d_in, _LANE // d_out
        P = p_in * p_out // math.gcd(p_in, p_out)
    else:
        P = 1
    k_in, k_out = P * d_in, P * d_out

    # --- Row tile (in packed rows): large by default, multiple of 8, shrunk
    # for small inputs; only force a >=2-way split when the chip really has
    # >=2 TensorCores (v7x) so single-TC chips don't pay an extra grid step.
    m = _ceil_div(n, P)                               # packed rows
    rb = _round_up(max(int(row_block), 8), 8)
    rb = min(rb, _round_up(max(_ceil_div(m, max(ncores, 1)), 8), 8))
    n_blocks = _ceil_div(m, rb)
    m_pad = n_blocks * rb
    n_pad = m_pad * P

    # --- Host-side layout prep (rows only are padded; features never inflated
    # in HBM).  Weight / bias stay f32 regardless of the activation dtype.
    x_p = x_flat if n_pad == n else jnp.pad(x_flat, ((0, n_pad - n), (0, 0)))
    x_p = x_p.reshape(m_pad, k_in)                    # contiguous -> free
    wt_big = jnp.kron(jnp.eye(P, dtype=jnp.float32),
                      W.astype(jnp.float32).T)        # (k_in, k_out) block-diag
    b_big = jnp.tile(b.astype(jnp.float32), P).reshape(1, k_out)

    # --- VMEM budget: ~2x the actual footprint (double-buffered x/out tiles +
    # default-buffered weight/bias), correct itemsize, capped at chip VMEM.
    vmem_need = (2 * rb * (k_in + k_out) * itemsize   # x / out tiles (x2 bufs)
                 + 2 * k_in * k_out * 4               # weight buffers (f32)
                 + 2 * 8 * k_out * 4)                 # bias buffers (f32)
    vmem_limit = int(min(vmem_cap, max(2 << 20, 2 * vmem_need)))

    cost = pl.CostEstimate(
        flops=2 * n * d_in * d_out,
        transcendentals=0,
        bytes_accessed=n * (d_in + d_out) * itemsize + (d_in * d_out + d_out) * 4)

    out = pl.pallas_call(
        _proj_kernel,
        out_shape=jax.ShapeDtypeStruct((m_pad, k_out), x.dtype),
        grid=(n_blocks,),
        in_specs=[
            pl.BlockSpec((rb, k_in), lambda i: (i, 0)),
            pl.BlockSpec((k_in, k_out), lambda i: (0, 0)),
            pl.BlockSpec((1, k_out), lambda i: (0, 0)),
        ],
        out_specs=pl.BlockSpec((rb, k_out), lambda i: (i, 0)),
        compiler_params=pltpu.CompilerParams(
            dimension_semantics=("parallel",),
            vmem_limit_bytes=vmem_limit),
        cost_estimate=cost,
    )(x_p, wt_big, b_big)

    # Un-pack rows from the lane axis (free reshape), trim padded rows only.
    return out.reshape(n_pad, d_out)[:n]


if __name__ == "__main__":
    key = jax.random.PRNGKey(0)
    k_x, k_w = jax.random.split(key)

    # input_multiplicities = [2, 3]  ->  D_in  = 2*1 + 3*2 = 8
    # output_multiplicities = [4, 2] ->  D_out = 4*1 + 2*2 = 8
    in_mults = [2, 3]
    out_mults = [4, 2]
    W, b = build_equivariant_linear(k_w, in_mults, out_mults)

    # x: (batch, seq, D_in) -> flattened to N = 4*37 = 148 rows inside the
    # wrapper (exercises the 16-rows-per-128-lane packing + row padding).
    x = jax.random.normal(k_x, (4, 37, 8), jnp.float32)

    y = general_projection(x, W, b)
    y = jax.block_until_ready(y)

    # Pure-JAX reference check.
    ref = x.reshape(-1, x.shape[-1]) @ W.T + b
    np.testing.assert_allclose(np.asarray(y), np.asarray(ref), rtol=1e-5, atol=1e-5)

    print("KERNEL_OK")
</pallas_src>

<mosaic_0001>
module attributes {stable_mosaic.version = 11 : i64} {
  func.func @_proj_kernel(%arg0: i32, %arg1: memref<16x128xf32, #tpu.memory_space<vmem>>, %arg2: memref<128x128xf32, #tpu.memory_space<vmem>>, %arg3: memref<1x128xf32, #tpu.memory_space<vmem>>, %arg4: memref<16x128xf32, #tpu.memory_space<vmem>>) attributes {dimension_semantics = [#tpu.dimension_semantics<parallel>], iteration_bounds = array<i64: 1>, scalar_prefetch = 0 : i64, scratch_operands = 0 : i64, tpu.core_type = #tpu.core_type<tc>, window_params = [{transform_indices = @transform_0, window_bounds = array<i64: 16, 128>}, {pipeline_mode = #tpu.pipeline_mode<synchronous>, transform_indices = @transform_1, window_bounds = array<i64: 128, 128>}, {pipeline_mode = #tpu.pipeline_mode<synchronous>, transform_indices = @transform_2, window_bounds = array<i64: 1, 128>}, {transform_indices = @transform_3, window_bounds = array<i64: 16, 128>}]} {
    %c0 = arith.constant 0 : index
    %c0_0 = arith.constant 0 : index
    %0 = vector.load %arg1[%c0, %c0_0] : memref<16x128xf32, #tpu.memory_space<vmem>>, vector<16x128xf32>
    %c0_1 = arith.constant 0 : index
    %c0_2 = arith.constant 0 : index
    %1 = vector.load %arg2[%c0_1, %c0_2] : memref<128x128xf32, #tpu.memory_space<vmem>>, vector<128x128xf32>
    %cst = arith.constant dense<0.000000e+00> : vector<16x128xf32>
    %2 = tpu.matmul %0, %1, %cst {dimension_numbers = #tpu.dot_dimension_numbers<[1], [0], [0], [1], [0, 0, 1, 1], [], []>} : vector<16x128xf32>, vector<128x128xf32>, vector<16x128xf32> -> vector<16x128xf32>
    %c0_3 = arith.constant 0 : index
    %c0_4 = arith.constant 0 : index
    %3 = vector.load %arg3[%c0_3, %c0_4] : memref<1x128xf32, #tpu.memory_space<vmem>>, vector<1x128xf32>
    %4 = vector.broadcast %3 : vector<1x128xf32> to vector<16x128xf32>
    %5 = arith.addf %2, %4 : vector<16x128xf32>
    %c0_5 = arith.constant 0 : index
    %c0_6 = arith.constant 0 : index
    %6 = vector.load %arg4[%c0_5, %c0_6] : memref<16x128xf32, #tpu.memory_space<vmem>>, vector<16x128xf32>
    tpu.vector_store %arg4[%c0_5, %c0_6], %5 {strides = array<i32>} : memref<16x128xf32, #tpu.memory_space<vmem>>, vector<16x128xf32>,
    return
  }
  func.func @transform_0(%arg0: i32) -> (i32, i32) {
    %c0_i32 = arith.constant 0 : i32
    %c0_i32_0 = arith.constant 0 : i32
    return %arg0, %c0_i32 : i32, i32
  }
  func.func @transform_1(%arg0: i32) -> (i32, i32) {
    %c0_i32 = arith.constant 0 : i32
    %c0_i32_0 = arith.constant 0 : i32
    %c0_i32_1 = arith.constant 0 : i32
    return %c0_i32, %c0_i32_0 : i32, i32
  }
  func.func @transform_2(%arg0: i32) -> (i32, i32) {
    %c0_i32 = arith.constant 0 : i32
    %c0_i32_0 = arith.constant 0 : i32
    %c0_i32_1 = arith.constant 0 : i32
    return %c0_i32, %c0_i32_0 : i32, i32
  }
  func.func @transform_3(%arg0: i32) -> (i32, i32) {
    %c0_i32 = arith.constant 0 : i32
    %c0_i32_0 = arith.constant 0 : i32
    return %arg0, %c0_i32 : i32, i32
  }
}

</mosaic_0001>

<llo_original>
// kernel: tpu_custom_call.1
$region0: #{tpu_custom_call.1}
  #allocation0 [shape = 'u32[]', space=smem, size = 0x4, offset = 0x4, fixed_abs, tag = 'smem constant byte address 0x4 - core index']
  #allocation1 [shape = 'u32[144,128]{1,0:T(1,128)}', space=vmem, size = 0x12000, scoped, tag = 'internal scratch']
  %s0 = inlined_call_operand.hbm [shape: f32[16,128], index: 0, kind: input, shape index: {}]
  %s1 = inlined_call_operand.hbm [shape: f32[128,128], index: 1, kind: input, shape index: {}]
  %s2 = inlined_call_operand.vmem [shape: f32[1,128], index: 2, kind: input, shape index: {}]
  %s3 = inlined_call_operand.hbm [shape: f32[16,128], index: 3, kind: output, shape index: {}]
  %s4 = sld [smem:[#allocation0]]
  $region30: #{tpu_custom_call.1} parent=0
    _
  %s6 = ssub.s32 1, %s4
  %s7 = scalar_select 0, %s6, %s4
  $region1: #{tpu_custom_call.1} parent=0
    #allocation2 [shape = 'u8[8192]{0}', space=vmem, size = 0x2000, scoped, tag = 'input window, operand 0, single buffered']
    #allocation3 [shape = 's32[1]{0}', space=sflag, size = 0x4, scoped, tag = 'scoped memory for tpu_custom_call.1']
    #allocation4 [shape = 's32[1]{0}', space=sflag, size = 0x4, scoped, tag = 'scoped memory for tpu_custom_call.1']
    #allocation5 [shape = 'u8[65536]{0}', space=vmem, size = 0x10000, scoped, tag = 'input window, operand 1, single buffered']
    #allocation6 [shape = 's32[1]{0}', space=sflag, size = 0x4, scoped, tag = 'scoped memory for tpu_custom_call.1']
    #allocation7 [shape = 'u8[8192]{0}', space=vmem, size = 0x2000, scoped, tag = 'output window, operand 0, single buffered']
    %8 = vsyncpa [#allocation3], 0
    %9 = vsyncpa [#allocation6], 0
    %10 = vsyncpa [#allocation4], 0
    // Predicated region
    $region2: #{tpu_custom_call.1} parent=1 // pred_check
      _
    $region3: #{tpu_custom_call.1} parent=1 // pred_check_branch
      %12 = sbr.rel (0) target = $region5
    $region4: #{tpu_custom_call.1} parent=1 // pred_region
      %s14 = ssub.s32 256, 256
      %15 = vsyncadd [#allocation3], %s14
      %s16 = sshll.u32 [#allocation2], 4
      %s17 = int_to_ptr.vmem [resolvable:$true] %s16
      %22 = dma.hbm_to_vmem [thread:$0]  %s0, 256, %s17, [#allocation3], 128, 128, 8
    $region5: #{tpu_custom_call.1} parent=1 // pred_fallthru
      _
    // Predicated region
    $region6: #{tpu_custom_call.1} parent=1 // pred_check
      _
    $region7: #{tpu_custom_call.1} parent=1 // pred_check_branch
      %24 = sbr.rel (0) target = $region9
    $region8: #{tpu_custom_call.1} parent=1 // pred_region
      %s26 = ssub.s32 2048, 2048
      %27 = vsyncadd [#allocation6], %s26
      %s28 = sshll.u32 [#allocation5], 4
      %s29 = int_to_ptr.vmem [resolvable:$true] %s28
      %34 = dma.hbm_to_vmem [thread:$0]  %s1, 2048, %s29, [#allocation6], 128, 128, 8
    $region9: #{tpu_custom_call.1} parent=1 // pred_fallthru
      _
    // Predicated region
    $region10: #{tpu_custom_call.1} parent=1 // pred_check
      _
    $region11: #{tpu_custom_call.1} parent=1 // pred_check_branch
      %36 = sbr.rel (0) target = $region13
    $region12: #{tpu_custom_call.1} parent=1 // pred_region
      _
    $region13: #{tpu_custom_call.1} parent=1 // pred_fallthru
      _
    // Predicated region
    $region14: #{tpu_custom_call.1} parent=1 // pred_check
      _
    $region15: #{tpu_custom_call.1} parent=1 // pred_check_branch
      %38 = sbr.rel (0) target = $region17
    $region16: #{tpu_custom_call.1} parent=1 // pred_region
      %39 = dma.done [#allocation3], 256
    $region17: #{tpu_custom_call.1} parent=1 // pred_fallthru
      _
    // Predicated region
    $region18: #{tpu_custom_call.1} parent=1 // pred_check
      _
    $region19: #{tpu_custom_call.1} parent=1 // pred_check_branch
      %41 = sbr.rel (0) target = $region21
    $region20: #{tpu_custom_call.1} parent=1 // pred_region
      %42 = dma.done [#allocation6], 2048
    $region21: #{tpu_custom_call.1} parent=1 // pred_fallthru
      _
    %v43 = vld [vmem:[#allocation2] sm:$0xff]
    %v44 = vld [vmem:[#allocation2 + $0x8] sm:$0xff]
    %v45 = vld [vmem:[#allocation5] sm:$0xff]
    %v46 = vld [vmem:[#allocation5 + $0x8] sm:$0xff]
    %v47 = vld [vmem:[#allocation5 + $0x10] sm:$0xff]
    %v48 = vld [vmem:[#allocation5 + $0x18] sm:$0xff]
    %v49 = vld [vmem:[#allocation5 + $0x20] sm:$0xff]
    %v50 = vld [vmem:[#allocation5 + $0x28] sm:$0xff]
    %v51 = vld [vmem:[#allocation5 + $0x30] sm:$0xff]
    %v52 = vld [vmem:[#allocation5 + $0x38] sm:$0xff]
    %v53 = vld [vmem:[#allocation5 + $0x40] sm:$0xff]
    %v54 = vld [vmem:[#allocation5 + $0x48] sm:$0xff]
    %v55 = vld [vmem:[#allocation5 + $0x50] sm:$0xff]
    %v56 = vld [vmem:[#allocation5 + $0x58] sm:$0xff]
    %v57 = vld [vmem:[#allocation5 + $0x60] sm:$0xff]
    %v58 = vld [vmem:[#allocation5 + $0x68] sm:$0xff]
    %v59 = vld [vmem:[#allocation5 + $0x70] sm:$0xff]
    %v60 = vld [vmem:[#allocation5 + $0x78] sm:$0xff]
    %v61 = vld [vmem:[%s2] sm:$0x1]
    %v63 = vlaneseq
    %v64 = vshrl.u32 %v63, 7
    %v65 = vsub.s32 0, %v64
    %v66 = vrot.slane %v61, %v65
    %68 = vmatprep.subr.mxu0 0.0
    %69 = vmatpush1.msra.mxu0 %v45
    %70 = vmatprep.subr.mxu0 0.0
    %71 = vmatpush1.msra.mxu0 %v46
    %72 = vmatprep.subr.mxu0 0.0
    %73 = vmatpush1.msra.mxu0 %v47
    %74 = vmatprep.subr.mxu0 0.0
    %75 = vmatpush1.msra.mxu0 %v48
    %76 = vmatprep.subr.mxu0 0.0
    %77 = vmatpush1.msra.mxu0 %v49
    %78 = vmatprep.subr.mxu0 0.0
    %79 = vmatpush1.msra.mxu0 %v50
    %80 = vmatprep.subr.mxu0 0.0
    %81 = vmatpush1.msra.mxu0 %v51
    %82 = vmatprep.subr.mxu0 0.0
    %83 = vmatpush1.msra.mxu0 %v52
    %84 = vmatprep.subr.mxu0 0.0
    %85 = vmatpush1.msra.mxu0 %v53
    %86 = vmatprep.subr.mxu0 0.0
    %87 = vmatpush1.msra.mxu0 %v54
    %88 = vmatprep.subr.mxu0 0.0
    %89 = vmatpush1.msra.mxu0 %v55
    %90 = vmatprep.subr.mxu0 0.0
    %91 = vmatpush1.msra.mxu0 %v56
    %92 = vmatprep.subr.mxu0 0.0
    %93 = vmatpush1.msra.mxu0 %v57
    %94 = vmatprep.subr.mxu0 0.0
    %95 = vmatpush1.msra.mxu0 %v58
    %96 = vmatprep.subr.mxu0 0.0
    %97 = vmatpush1.msra.mxu0 %v59
    %98 = vmatprep.subr.mxu0 0.0
    %99 = vmatpush1.msra.mxu0 %v60
    %100 = vmatprep.subr.mxu0 0.0
    %101 = vmatpush1.msra.mxu0 0.0
    %102 = vmatprep.subr.mxu0 0.0
    %103 = vmatpush1.msra.mxu0 0.0
    %104 = vmatprep.subr.mxu0 0.0
    %105 = vmatpush1.msra.mxu0 0.0
    %106 = vmatprep.subr.mxu0 0.0
    %107 = vmatpush1.msra.mxu0 0.0
    %108 = vmatprep.subr.mxu0 0.0
    %109 = vmatpush1.msra.mxu0 0.0
    %110 = vmatprep.subr.mxu0 0.0
    %111 = vmatpush1.msra.mxu0 0.0
    %112 = vmatprep.subr.mxu0 0.0
    %113 = vmatpush1.msra.mxu0 0.0
    %114 = vmatprep.subr.mxu0 0.0
    %115 = vmatpush1.msra.mxu0 0.0
    %116 = vmatprep.subr.mxu0 0.0
    %117 = vmatpush1.msra.mxu0 0.0
    %118 = vmatprep.subr.mxu0 0.0
    %119 = vmatpush1.msra.mxu0 0.0
    %120 = vmatprep.subr.mxu0 0.0
    %121 = vmatpush1.msra.mxu0 0.0
    %122 = vmatprep.subr.mxu0 0.0
    %123 = vmatpush1.msra.mxu0 0.0
    %124 = vmatprep.subr.mxu0 0.0
    %125 = vmatpush1.msra.mxu0 0.0
    %126 = vmatprep.subr.mxu0 0.0
    %127 = vmatpush1.msra.mxu0 0.0
    %128 = vmatprep.subr.mxu0 0.0
    %129 = vmatpush1.msra.mxu0 0.0
    %130 = vmatprep.subr.mxu0 0.0
    %131 = vmatpush1.msra.mxu0 0.0
    %132 = vmatprep.mubr.f32.mxu0 0.0
    %133 = vmatmul.mubr.f32.gmra.mrb[0].mxu0 %v43
    %v134 = vpop.f32.mrb[0].mxu0
    %v135 = vadd.f32 %v66, %v134
    %v136 = vpop.f32.mrb[0].mxu0
    %137 = vmatprep.mubr.f32.mxu0 0.0
    %138 = vmatmul.mubr.f32.gmra.mrb[0].mxu0 %v44
    %v139 = vpop.f32.mrb[0].mxu0
    %v140 = vadd.f32 %v66, %v139
    %v141 = vpop.f32.mrb[0].mxu0
    %142 = vdwg.mxu0
    %143 = vst [vmem:[#allocation7] sm:$0xff] %v135
    %144 = vst [vmem:[#allocation7 + $0x8] sm:$0xff] %v140
    // Predicated region
    $region22: #{tpu_custom_call.1} parent=1 // pred_check
      _
    $region23: #{tpu_custom_call.1} parent=1 // pred_check_branch
      %146 = sbr.rel (0) target = $region25
    $region24: #{tpu_custom_call.1} parent=1 // pred_region
      %s148 = ssub.s32 256, 256
      %149 = vsyncadd [#allocation4], %s148
      %s150 = sshll.u32 [#allocation7], 4
      %s151 = int_to_ptr.vmem [resolvable:$true] %s150
      %156 = dma.vmem_to_hbm [thread:$0]  %s151, 256, %s3, [#allocation4], 128, 128, 8
    $region25: #{tpu_custom_call.1} parent=1 // pred_fallthru
      _
    // Predicated region
    $region26: #{tpu_custom_call.1} parent=1 // pred_check
      _
    $region27: #{tpu_custom_call.1} parent=1 // pred_check_branch
      %158 = sbr.rel (0) target = $region29
    $region28: #{tpu_custom_call.1} parent=1 // pred_region
      %159 = dma.done [#allocation4], 256
    $region29: #{tpu_custom_call.1} parent=1 // pred_fallthru
      _
    %160 = vsyncpa [#allocation3], 1
    %161 = vsyncpa [#allocation6], 1
    %162 = vsyncpa [#allocation4], 1

</llo_original>
